<compile_context>
chip_gen: v6e
topology: v6e:2x2x1
jax: 0.10.0
libtpu: 0.0.40
codegen_flags: <defaults>
</compile_context>

<pallas_src>
import functools

import jax
import jax.numpy as jnp
from jax.experimental import pallas as pl
from jax.experimental.pallas import tpu as pltpu  # noqa: F401  (TPU backend)

HIDDEN_PAD = 128   # hidden=50 padded to one full lane width
CLASS_PAD = 128    # num_classes=10 padded to one full lane width


def mlp_kernel(x_ref, w1_ref, b1_ref, w2_ref, b2_ref, o_ref):
    # Hot path: two bf16 MXU matmuls (f32 accumulate) + f32 VPU bias/ReLU,
    # everything resident in VMEM. x arrives f32; the bf16 cast is a free
    # VPU op here instead of a separate XLA pass in the wrapper.
    xb = x_ref[...].astype(jnp.bfloat16)
    h = jnp.dot(xb, w1_ref[...], preferred_element_type=jnp.float32)
    h = jnp.maximum(h + b1_ref[...], 0.0)            # bias + ReLU in f32 (v5e-safe)
    hb = h.astype(jnp.bfloat16)                      # single f32->bf16 pack after ReLU
    y = jnp.dot(hb, w2_ref[...], preferred_element_type=jnp.float32)
    o_ref[...] = (y + b2_ref[...]).astype(o_ref.dtype)


def prepare_params(w1, b1, w2, b2):
    """Pad/cast parameters ONCE (init time). Returns padded (w1, b1, w2, b2).

    w1: (D_in, H) -> (D_in, 128) bf16 ; b1: (1, H) -> (1, 128) f32
    w2: (H, C)    -> (128, 128)  bf16 ; b2: (1, C) -> (1, 128) f32
    Zero-filled padding keeps padded hidden units / classes inert.
    """
    D_in, H = w1.shape
    C = w2.shape[1]
    w1p = jnp.zeros((D_in, HIDDEN_PAD), jnp.bfloat16).at[:, :H].set(
        w1.astype(jnp.bfloat16))
    b1p = jnp.zeros((1, HIDDEN_PAD), jnp.float32).at[:, :H].set(
        b1.astype(jnp.float32))
    w2p = jnp.zeros((HIDDEN_PAD, CLASS_PAD), jnp.bfloat16).at[:H, :C].set(
        w2.astype(jnp.bfloat16))
    b2p = jnp.zeros((1, CLASS_PAD), jnp.float32).at[:, :C].set(
        b2.astype(jnp.float32))
    return w1p, b1p, w2p, b2p


@functools.partial(jax.jit, static_argnames=("num_classes",))
def nn_forward(x, w1p, b1p, w2p, b2p, *, num_classes):
    """x: (B, D_in) f32; padded params from prepare_params(). Returns (B, C) f32."""
    B, D_in = x.shape
    Hp, Cp = HIDDEN_PAD, CLASS_PAD

    # Single grid point: whole problem fits VMEM with huge headroom.
    full = lambda shape: pl.BlockSpec(shape, lambda: tuple(0 for _ in shape))

    bytes_accessed = (
        x.size * 4                                   # f32 activations in
        + w1p.size * 2 + w2p.size * 2                # bf16 weights
        + (b1p.size + b2p.size) * 4                  # f32 biases
        + B * Cp * 4                                 # f32 output
    )
    cost = pl.CostEstimate(
        flops=2 * B * D_in * Hp + 2 * B * Hp * Cp,
        transcendentals=0,
        bytes_accessed=bytes_accessed,
    )

    out_padded = pl.pallas_call(
        mlp_kernel,
        out_shape=jax.ShapeDtypeStruct((B, Cp), jnp.float32),
        grid=(),
        in_specs=[
            full((B, D_in)),
            full((D_in, Hp)),
            full((1, Hp)),
            full((Hp, Cp)),
            full((1, Cp)),
        ],
        out_specs=full((B, Cp)),
        cost_estimate=cost,
    )(x, w1p, b1p, w2p, b2p)

    # Slice back to the real class count; fuses inside this jit'd executable.
    # (Consumers that can handle the padded (B, 128) logits should use
    #  out_padded directly and mask classes >= num_classes in the loss.)
    return out_padded[:, :num_classes]

    # TODO(synk): if batch grows to >~4k rows, add a grid over the batch axis
    # (block (512, D_in), dimension_semantics=("parallel",)) to use both v7x
    # TensorCores and restore double-buffering; budget tiles against v7x's
    # 32 MiB default scoped VMEM (64 MiB physical).


def reference_forward_f32(x, w1, b1, w2, b2):
    h = jnp.maximum(x @ w1 + b1, 0.0)
    return h @ w2 + b2


def reference_forward_bf16(x, w1, b1, w2, b2):
    # Mirrors the kernel's dtype choices: bf16 matmul operands, f32 accumulate,
    # f32 bias/ReLU, bf16 re-pack of h before the second matmul.
    h = jnp.dot(x.astype(jnp.bfloat16), w1.astype(jnp.bfloat16),
                preferred_element_type=jnp.float32)
    h = jnp.maximum(h + b1, 0.0).astype(jnp.bfloat16)
    return jnp.dot(h, w2.astype(jnp.bfloat16),
                   preferred_element_type=jnp.float32) + b2


if __name__ == "__main__":
    input_size = 784
    hidden = 50
    num_classes = 10
    batch = 64

    key = jax.random.PRNGKey(0)
    kx, k1, kb1, k2, kb2 = jax.random.split(key, 5)

    # Deterministic parameter init (torch nn.Linear-style uniform bounds).
    x = jax.random.uniform(kx, (batch, input_size), dtype=jnp.float32)
    bound1 = 1.0 / jnp.sqrt(input_size)
    w1 = jax.random.uniform(k1, (input_size, hidden), jnp.float32, -bound1, bound1)
    b1 = jax.random.uniform(kb1, (1, hidden), jnp.float32, -bound1, bound1)
    bound2 = 1.0 / jnp.sqrt(hidden)
    w2 = jax.random.uniform(k2, (hidden, num_classes), jnp.float32, -bound2, bound2)
    b2 = jax.random.uniform(kb2, (1, num_classes), jnp.float32, -bound2, bound2)

    # Pad/cast parameters ONCE (not per forward call).
    w1p, b1p, w2p, b2p = jax.block_until_ready(prepare_params(w1, b1, w2, b2))

    out = nn_forward(x, w1p, b1p, w2p, b2p, num_classes=num_classes)
    out = jax.block_until_ready(out)
    assert out.shape == (batch, num_classes)

    # Exact-path check against a reference using the same bf16 casts.
    ref_bf16 = reference_forward_bf16(x, w1, b1, w2, b2)
    assert jnp.allclose(out, ref_bf16, atol=2e-3, rtol=2e-3), "mismatch vs bf16 reference"

    # Sanity check against the full-precision f32 reference (bf16 rounding slack).
    ref_f32 = reference_forward_f32(x, w1, b1, w2, b2)
    assert jnp.allclose(out, ref_f32, atol=2e-2, rtol=2e-2), "mismatch vs f32 reference"

    print("KERNEL_OK")
</pallas_src>

<mosaic_0001>
module attributes {stable_mosaic.version = 11 : i64} {
  func.func @mlp_kernel(%arg0: memref<64x784xf32, #tpu.memory_space<vmem>>, %arg1: memref<784x128xbf16, #tpu.memory_space<vmem>>, %arg2: memref<1x128xf32, #tpu.memory_space<vmem>>, %arg3: memref<128x128xbf16, #tpu.memory_space<vmem>>, %arg4: memref<1x128xf32, #tpu.memory_space<vmem>>, %arg5: memref<64x128xf32, #tpu.memory_space<vmem>>) attributes {dimension_semantics = [], scalar_prefetch = 0 : i64, scratch_operands = 0 : i64, tpu.core_type = #tpu.core_type<tc>} {
    %c0 = arith.constant 0 : index
    %c0_0 = arith.constant 0 : index
    %0 = vector.load %arg0[%c0, %c0_0] : memref<64x784xf32, #tpu.memory_space<vmem>>, vector<64x784xf32>
    %1 = arith.truncf %0 : vector<64x784xf32> to vector<64x784xbf16>
    %c0_1 = arith.constant 0 : index
    %c0_2 = arith.constant 0 : index
    %2 = vector.load %arg1[%c0_1, %c0_2] : memref<784x128xbf16, #tpu.memory_space<vmem>>, vector<784x128xbf16>
    %cst = arith.constant dense<0.000000e+00> : vector<64x128xf32>
    %3 = tpu.matmul %1, %2, %cst {dimension_numbers = #tpu.dot_dimension_numbers<[1], [0], [0], [1], [0, 0, 1, 1], [], []>} : vector<64x784xbf16>, vector<784x128xbf16>, vector<64x128xf32> -> vector<64x128xf32>
    %c0_3 = arith.constant 0 : index
    %c0_4 = arith.constant 0 : index
    %4 = vector.load %arg2[%c0_3, %c0_4] : memref<1x128xf32, #tpu.memory_space<vmem>>, vector<1x128xf32>
    %5 = vector.broadcast %4 : vector<1x128xf32> to vector<64x128xf32>
    %6 = arith.addf %3, %5 : vector<64x128xf32>
    %cst_5 = arith.constant 0.000000e+00 : f32
    %7 = vector.broadcast %cst_5 : f32 to vector<64x128xf32>
    %8 = arith.maximumf %6, %7 : vector<64x128xf32>
    %9 = arith.truncf %8 : vector<64x128xf32> to vector<64x128xbf16>
    %c0_6 = arith.constant 0 : index
    %c0_7 = arith.constant 0 : index
    %10 = vector.load %arg3[%c0_6, %c0_7] : memref<128x128xbf16, #tpu.memory_space<vmem>>, vector<128x128xbf16>
    %cst_8 = arith.constant dense<0.000000e+00> : vector<64x128xf32>
    %11 = tpu.matmul %9, %10, %cst_8 {dimension_numbers = #tpu.dot_dimension_numbers<[1], [0], [0], [1], [0, 0, 1, 1], [], []>} : vector<64x128xbf16>, vector<128x128xbf16>, vector<64x128xf32> -> vector<64x128xf32>
    %c0_9 = arith.constant 0 : index
    %c0_10 = arith.constant 0 : index
    %12 = vector.load %arg4[%c0_9, %c0_10] : memref<1x128xf32, #tpu.memory_space<vmem>>, vector<1x128xf32>
    %13 = vector.broadcast %12 : vector<1x128xf32> to vector<64x128xf32>
    %14 = arith.addf %11, %13 : vector<64x128xf32>
    %c0_11 = arith.constant 0 : index
    %c0_12 = arith.constant 0 : index
    %15 = vector.load %arg5[%c0_11, %c0_12] : memref<64x128xf32, #tpu.memory_space<vmem>>, vector<64x128xf32>
    tpu.vector_store %arg5[%c0_11, %c0_12], %14 {strides = array<i32>} : memref<64x128xf32, #tpu.memory_space<vmem>>, vector<64x128xf32>,
    return
  }
}

</mosaic_0001>

<llo_original>
// kernel: nn_forward.1
$region0: #{nn_forward.1}
  #allocation0 [shape = 'u32[]', space=smem, size = 0x4, offset = 0x4, fixed_abs, tag = 'smem constant byte address 0x4 - core index']
  #allocation1 [shape = 'u32[144,128]{1,0:T(1,128)}', space=vmem, size = 0x12000, scoped, tag = 'internal scratch']
  %s0 = inlined_call_operand.hbm [shape: f32[64,784], index: 0, kind: input, shape index: {}]
  %s1 = inlined_call_operand.hbm [shape: bf16[784,128], index: 1, kind: input, shape index: {}]
  %s2 = inlined_call_operand.vmem [shape: f32[1,128], index: 2, kind: input, shape index: {}]
  %s3 = inlined_call_operand.hbm [shape: bf16[128,128], index: 3, kind: input, shape index: {}]
  %s4 = inlined_call_operand.vmem [shape: f32[1,128], index: 4, kind: input, shape index: {}]
  %s5 = inlined_call_operand.vmem [shape: f32[64,128], index: 5, kind: output, shape index: {}]
  %s6 = sld [smem:[#allocation0]]
  $region42: #{nn_forward.1} parent=0
    _
  %s8 = ssub.s32 1, %s6
  %s9 = scalar_select 0, %s8, %s6
  $region1: #{nn_forward.1} parent=0
    #allocation2 [shape = 'u8[229376]{0}', space=vmem, size = 0x38000, scoped, tag = 'input window, operand 0, single buffered']
    #allocation3 [shape = 's32[1]{0}', space=sflag, size = 0x4, scoped, tag = 'scoped memory for nn_forward.1']
    #allocation4 [shape = 'u8[200704]{0}', space=vmem, size = 0x31000, scoped, tag = 'input window, operand 1, single buffered']
    #allocation5 [shape = 's32[1]{0}', space=sflag, size = 0x4, scoped, tag = 'scoped memory for nn_forward.1']
    #allocation6 [shape = 'u8[32768]{0}', space=vmem, size = 0x8000, scoped, tag = 'input window, operand 3, single buffered']
    %10 = vsyncpa [#allocation3], 0
    %11 = vsyncpa [#allocation5], 0
    // Predicated region
    $region2: #{nn_forward.1} parent=1 // pred_check
      _
    $region3: #{nn_forward.1} parent=1 // pred_check_branch
      %13 = sbr.rel (0) target = $region5
    $region4: #{nn_forward.1} parent=1 // pred_region
      %s15 = ssub.s32 7168, 7168
      %16 = vsyncadd [#allocation3], %s15
      %s17 = sshll.u32 [#allocation2], 4
      %s18 = int_to_ptr.vmem [resolvable:$true] %s17
      %23 = dma.hbm_to_vmem [thread:$0]  %s0, 7168, %s18, [#allocation3], 896, 896, 56
    $region5: #{nn_forward.1} parent=1 // pred_fallthru
      _
    // Predicated region
    $region6: #{nn_forward.1} parent=1 // pred_check
      _
    $region7: #{nn_forward.1} parent=1 // pred_check_branch
      %25 = sbr.rel (0) target = $region9
    $region8: #{nn_forward.1} parent=1 // pred_region
      %s27 = ssub.s32 6272, 6272
      %28 = vsyncadd [#allocation5], %s27
      %s29 = sshll.u32 [#allocation4], 4
      %s30 = int_to_ptr.vmem [resolvable:$true] %s29
      %35 = dma.hbm_to_vmem [thread:$0]  %s1, 6272, %s30, [#allocation5], 64, 64, 4
    $region9: #{nn_forward.1} parent=1 // pred_fallthru
      _
    // Predicated region
    $region10: #{nn_forward.1} parent=1 // pred_check
      _
    $region11: #{nn_forward.1} parent=1 // pred_check_branch
      %37 = sbr.rel (0) target = $region13
    $region12: #{nn_forward.1} parent=1 // pred_region
      _
    $region13: #{nn_forward.1} parent=1 // pred_fallthru
      _
    // Predicated region
    $region14: #{nn_forward.1} parent=1 // pred_check
      _
    $region15: #{nn_forward.1} parent=1 // pred_check_branch
      %39 = sbr.rel (0) target = $region17
    $region16: #{nn_forward.1} parent=1 // pred_region
      %s41 = ssub.s32 1024, 1024
      %42 = vsyncadd [#allocation5], %s41
      %s43 = sshll.u32 [#allocation6], 4
      %s44 = int_to_ptr.vmem [resolvable:$true] %s43
      %49 = dma.hbm_to_vmem [thread:$0]  %s3, 1024, %s44, [#allocation5], 64, 64, 4
    $region17: #{nn_forward.1} parent=1 // pred_fallthru
      _
    // Predicated region
    $region18: #{nn_forward.1} parent=1 // pred_check
      _
    $region19: #{nn_forward.1} parent=1 // pred_check_branch
      %51 = sbr.rel (0) target = $region21
    $region20: #{nn_forward.1} parent=1 // pred_region
      _
    $region21: #{nn_forward.1} parent=1 // pred_fallthru
      _
    // Predicated region
    $region22: #{nn_forward.1} parent=1 // pred_check
      _
    $region23: #{nn_forward.1} parent=1 // pred_check_branch
      %53 = sbr.rel (0) target = $region25
    $region24: #{nn_forward.1} parent=1 // pred_region
      %54 = dma.done [#allocation3], 7168
    $region25: #{nn_forward.1} parent=1 // pred_fallthru
      _
    // Predicated region
    $region26: #{nn_forward.1} parent=1 // pred_check
      _
    $region27: #{nn_forward.1} parent=1 // pred_check_branch
      %56 = sbr.rel (0) target = $region29
    $region28: #{nn_forward.1} parent=1 // pred_region
      %57 = dma.done [#allocation5], 6272
    $region29: #{nn_forward.1} parent=1 // pred_fallthru
      _
    // Predicated region
    $region30: #{nn_forward.1} parent=1 // pred_check
      _
    $region31: #{nn_forward.1} parent=1 // pred_check_branch
      %59 = sbr.rel (0) target = $region33
    $region32: #{nn_forward.1} parent=1 // pred_region
      %60 = dma.done [#allocation5], 1024
    $region33: #{nn_forward.1} parent=1 // pred_fallthru
      _
    %v62 = vld [vmem:[#allocation2] sm:$0xff]
    %v63 = vld [vmem:[#allocation2 + $0x8] sm:$0xff]
    %v64 = vld [vmem:[#allocation2 + $0x10] sm:$0xff]
    %v65 = vld [vmem:[#allocation2 + $0x18] sm:$0xff]
    %v66 = vld [vmem:[#allocation2 + $0x20] sm:$0xff]
    %v67 = vld [vmem:[#allocation2 + $0x28] sm:$0xff]
    %v68 = vld [vmem:[#allocation2 + $0x30] sm:$0xff]
    %v69 = vld [vmem:[#allocation2 + $0x38] sm:$0xff]
    %v70 = vld [vmem:[#allocation2 + $0x40] sm:$0xff]
    %v71 = vld [vmem:[#allocation2 + $0x48] sm:$0xff]
    %v72 = vld [vmem:[#allocation2 + $0x50] sm:$0xff]
    %v73 = vld [vmem:[#allocation2 + $0x58] sm:$0xff]
    %v74 = vld [vmem:[#allocation2 + $0x60] sm:$0xff]
    %v75 = vld [vmem:[#allocation2 + $0x68] sm:$0xff]
    %v76 = vld [vmem:[#allocation2 + $0x70] sm:$0xff]
    %v77 = vld [vmem:[#allocation2 + $0x78] sm:$0xff]
    %v78 = vld [vmem:[#allocation2 + $0x80] sm:$0xff]
    %v79 = vld [vmem:[#allocation2 + $0x88] sm:$0xff]
    %v80 = vld [vmem:[#allocation2 + $0x90] sm:$0xff]
    %v81 = vld [vmem:[#allocation2 + $0x98] sm:$0xff]
    %v82 = vld [vmem:[#allocation2 + $0xa0] sm:$0xff]
    %v83 = vld [vmem:[#allocation2 + $0xa8] sm:$0xff]
    %v84 = vld [vmem:[#allocation2 + $0xb0] sm:$0xff]
    %v85 = vld [vmem:[#allocation2 + $0xb8] sm:$0xff]
    %v86 = vld [vmem:[#allocation2 + $0xc0] sm:$0xff]
    %v87 = vld [vmem:[#allocation2 + $0xc8] sm:$0xff]
    %v88 = vld [vmem:[#allocation2 + $0xd0] sm:$0xff]
    %v89 = vld [vmem:[#allocation2 + $0xd8] sm:$0xff]
    %v90 = vld [vmem:[#allocation2 + $0xe0] sm:$0xff]
    %v91 = vld [vmem:[#allocation2 + $0xe8] sm:$0xff]
    %v92 = vld [vmem:[#allocation2 + $0xf0] sm:$0xff]
    %v93 = vld [vmem:[#allocation2 + $0xf8] sm:$0xff]
    %v94 = vld [vmem:[#allocation2 + $0x100] sm:$0xff]
    %v95 = vld [vmem:[#allocation2 + $0x108] sm:$0xff]
    %v96 = vld [vmem:[#allocation2 + $0x110] sm:$0xff]
    %v97 = vld [vmem:[#allocation2 + $0x118] sm:$0xff]
    %v98 = vld [vmem:[#allocation2 + $0x120] sm:$0xff]
    %v99 = vld [vmem:[#allocation2 + $0x128] sm:$0xff]
    %v100 = vld [vmem:[#allocation2 + $0x130] sm:$0xff]
    %v101 = vld [vmem:[#allocation2 + $0x138] sm:$0xff]
    %v102 = vld [vmem:[#allocation2 + $0x140] sm:$0xff]
    %v103 = vld [vmem:[#allocation2 + $0x148] sm:$0xff]
    %v104 = vld [vmem:[#allocation2 + $0x150] sm:$0xff]
    %v105 = vld [vmem:[#allocation2 + $0x158] sm:$0xff]
    %v106 = vld [vmem:[#allocation2 + $0x160] sm:$0xff]
    %v107 = vld [vmem:[#allocation2 + $0x168] sm:$0xff]
    %v108 = vld [vmem:[#allocation2 + $0x170] sm:$0xff]
    %v109 = vld [vmem:[#allocation2 + $0x178] sm:$0xff]
    %v110 = vld [vmem:[#allocation2 + $0x180] sm:$0xff]
    %v111 = vld [vmem:[#allocation2 + $0x188] sm:$0xff]
    %v112 = vld [vmem:[#allocation2 + $0x190] sm:$0xff]
    %v113 = vld [vmem:[#allocation2 + $0x198] sm:$0xff]
    %v114 = vld [vmem:[#allocation2 + $0x1a0] sm:$0xff]
    %v115 = vld [vmem:[#allocation2 + $0x1a8] sm:$0xff]
    %v116 = vld [vmem:[#allocation2 + $0x1b0] sm:$0xff]
    %v117 = vld [vmem:[#allocation2 + $0x1b8] sm:$0xff]
    %v118 = vpack.c.bf16 %v69, %v62
    %v119 = vpack.c.bf16 %v70, %v63
    %v120 = vpack.c.bf16 %v71, %v64
    %v121 = vpack.c.bf16 %v72, %v65
    %v122 = vpack.c.bf16 %v73, %v66
    %v123 = vpack.c.bf16 %v74, %v67
    %v124 = vpack.c.bf16 %v75, %v68
    %v125 = vpack.c.bf16 %v83, %v76
    %v126 = vpack.c.bf16 %v84, %v77
    %v127 = vpack.c.bf16 %v85, %v78
    %v128 = vpack.c.bf16 %v86, %v79
    %v129 = vpack.c.bf16 %v87, %v80
    %v130 = vpack.c.bf16 %v88, %v81
    %v131 = vpack.c.bf16 %v89, %v82
    %v132 = vpack.c.bf16 %v97, %v90
    %v133 = vpack.c.bf16 %v98, %v91
    %v134 = vpack.c.bf16 %v99, %v92
    %v135 = vpack.c.bf16 %v100, %v93
    %v136 = vpack.c.bf16 %v101, %v94
    %v137 = vpack.c.bf16 %v102, %v95
    %v138 = vpack.c.bf16 %v103, %v96
    %v139 = vpack.c.bf16 %v111, %v104
    %v140 = vpack.c.bf16 %v112, %v105
    %v141 = vpack.c.bf16 %v113, %v106
    %v142 = vpack.c.bf16 %v114, %v107
    %v143 = vpack.c.bf16 %v115, %v108
    %v144 = vpack.c.bf16 %v116, %v109
    %v145 = vpack.c.bf16 %v117, %v110
    %v146 = vld [vmem:[#allocation4] sm:$0xf]
    %v147 = vld [vmem:[#allocation4 + $0x4] sm:$0xf]
    %v148 = vld [vmem:[#allocation4 + $0x8] sm:$0xf]
    %v149 = vld [vmem:[#allocation4 + $0xc] sm:$0xf]
    %v150 = vld [vmem:[#allocation4 + $0x10] sm:$0xf]
    %v151 = vld [vmem:[#allocation4 + $0x14] sm:$0xf]
    %v152 = vld [vmem:[#allocation4 + $0x18] sm:$0xf]
    %v153 = vld [vmem:[#allocation4 + $0x1c] sm:$0xf]
    %v154 = vld [vmem:[#allocation4 + $0x20] sm:$0xf]
    %v155 = vld [vmem:[#allocation4 + $0x24] sm:$0xf]
    %v156 = vld [vmem:[#allocation4 + $0x28] sm:$0xf]
    %v157 = vld [vmem:[#allocation4 + $0x2c] sm:$0xf]
    %v158 = vld [vmem:[#allocation4 + $0x30] sm:$0xf]
    %v159 = vld [vmem:[#allocation4 + $0x34] sm:$0xf]
    %v160 = vld [vmem:[#allocation4 + $0x38] sm:$0xf]
    %v161 = vld [vmem:[#allocation4 + $0x3c] sm:$0xf]
    %v162 = vld [vmem:[#allocation4 + $0x40] sm:$0xf]
    %v163 = vld [vmem:[#allocation4 + $0x44] sm:$0xf]
    %v164 = vld [vmem:[#allocation4 + $0x48] sm:$0xf]
    %v165 = vld [vmem:[#allocation4 + $0x4c] sm:$0xf]
    %v166 = vld [vmem:[#allocation4 + $0x50] sm:$0xf]
    %v167 = vld [vmem:[#allocation4 + $0x54] sm:$0xf]
    %v168 = vld [vmem:[#allocation4 + $0x58] sm:$0xf]
    %v169 = vld [vmem:[#allocation4 + $0x5c] sm:$0xf]
    %v170 = vld [vmem:[#allocation4 + $0x60] sm:$0xf]
    %v171 = vld [vmem:[#allocation4 + $0x64] sm:$0xf]
    %v172 = vld [vmem:[#allocation4 + $0x68] sm:$0xf]
    %v173 = vld [vmem:[#allocation4 + $0x6c] sm:$0xf]
    %v174 = vld [vmem:[#allocation4 + $0x70] sm:$0xf]
    %v175 = vld [vmem:[#allocation4 + $0x74] sm:$0xf]
    %v176 = vld [vmem:[#allocation4 + $0x78] sm:$0xf]
    %v177 = vld [vmem:[#allocation4 + $0x7c] sm:$0xf]
    %v178 = vld [vmem:[#allocation4 + $0x80] sm:$0xf]
    %v179 = vld [vmem:[#allocation4 + $0x84] sm:$0xf]
    %v180 = vld [vmem:[#allocation4 + $0x88] sm:$0xf]
    %v181 = vld [vmem:[#allocation4 + $0x8c] sm:$0xf]
    %v182 = vld [vmem:[#allocation4 + $0x90] sm:$0xf]
    %v183 = vld [vmem:[#allocation4 + $0x94] sm:$0xf]
    %v184 = vld [vmem:[#allocation4 + $0x98] sm:$0xf]
    %v185 = vld [vmem:[#allocation4 + $0x9c] sm:$0xf]
    %v186 = vld [vmem:[#allocation4 + $0xa0] sm:$0xf]
    %v187 = vld [vmem:[#allocation4 + $0xa4] sm:$0xf]
    %v188 = vld [vmem:[#allocation4 + $0xa8] sm:$0xf]
    %v189 = vld [vmem:[#allocation4 + $0xac] sm:$0xf]
    %v190 = vld [vmem:[#allocation4 + $0xb0] sm:$0xf]
    %v191 = vld [vmem:[#allocation4 + $0xb4] sm:$0xf]
    %v192 = vld [vmem:[#allocation4 + $0xb8] sm:$0xf]
    %v193 = vld [vmem:[#allocation4 + $0xbc] sm:$0xf]
    %v194 = vld [vmem:[#allocation4 + $0xc0] sm:$0xf]
    %v195 = vld [vmem:[#allocation4 + $0xc4] sm:$0xf]
    %v196 = vld [vmem:[#allocation4 + $0xc8] sm:$0xf]
    %v197 = vld [vmem:[#allocation4 + $0xcc] sm:$0xf]
    %v198 = vld [vmem:[#allocation4 + $0xd0] sm:$0xf]
    %v199 = vld [vmem:[#allocation4 + $0xd4] sm:$0xf]
    %v200 = vld [vmem:[#allocation4 + $0xd8] sm:$0xf]
    %v201 = vld [vmem:[#allocation4 + $0xdc] sm:$0xf]
    %v202 = vld [vmem:[#allocation4 + $0xe0] sm:$0xf]
    %v203 = vld [vmem:[#allocation4 + $0xe4] sm:$0xf]
    %v204 = vld [vmem:[#allocation4 + $0xe8] sm:$0xf]
    %v205 = vld [vmem:[#allocation4 + $0xec] sm:$0xf]
    %v206 = vld [vmem:[#allocation4 + $0xf0] sm:$0xf]
    %v207 = vld [vmem:[#allocation4 + $0xf4] sm:$0xf]
    %v208 = vld [vmem:[#allocation4 + $0xf8] sm:$0xf]
    %v209 = vld [vmem:[#allocation4 + $0xfc] sm:$0xf]
    %v210 = vld [vmem:[#allocation4 + $0x100] sm:$0xf]
    %v211 = vld [vmem:[#allocation4 + $0x104] sm:$0xf]
    %v212 = vld [vmem:[#allocation4 + $0x108] sm:$0xf]
    %v213 = vld [vmem:[#allocation4 + $0x10c] sm:$0xf]
    %v214 = vld [vmem:[#allocation4 + $0x110] sm:$0xf]
    %v215 = vld [vmem:[#allocation4 + $0x114] sm:$0xf]
    %v216 = vld [vmem:[#allocation4 + $0x118] sm:$0xf]
    %v217 = vld [vmem:[#allocation4 + $0x11c] sm:$0xf]
    %v218 = vld [vmem:[#allocation4 + $0x120] sm:$0xf]
    %v219 = vld [vmem:[#allocation4 + $0x124] sm:$0xf]
    %v220 = vld [vmem:[#allocation4 + $0x128] sm:$0xf]
    %v221 = vld [vmem:[#allocation4 + $0x12c] sm:$0xf]
    %v222 = vld [vmem:[#allocation4 + $0x130] sm:$0xf]
    %v223 = vld [vmem:[#allocation4 + $0x134] sm:$0xf]
    %v224 = vld [vmem:[#allocation4 + $0x138] sm:$0xf]
    %v225 = vld [vmem:[#allocation4 + $0x13c] sm:$0xf]
    %v226 = vld [vmem:[#allocation4 + $0x140] sm:$0xf]
    %v227 = vld [vmem:[#allocation4 + $0x144] sm:$0xf]
    %v228 = vld [vmem:[#allocation4 + $0x148] sm:$0xf]
    %v229 = vld [vmem:[#allocation4 + $0x14c] sm:$0xf]
    %v230 = vld [vmem:[#allocation4 + $0x150] sm:$0xf]
    %v231 = vld [vmem:[#allocation4 + $0x154] sm:$0xf]
    %v232 = vld [vmem:[#allocation4 + $0x158] sm:$0xf]
    %v233 = vld [vmem:[#allocation4 + $0x15c] sm:$0xf]
    %v234 = vld [vmem:[#allocation4 + $0x160] sm:$0xf]
    %v235 = vld [vmem:[#allocation4 + $0x164] sm:$0xf]
    %v236 = vld [vmem:[#allocation4 + $0x168] sm:$0xf]
    %v237 = vld [vmem:[#allocation4 + $0x16c] sm:$0xf]
    %v238 = vld [vmem:[#allocation4 + $0x170] sm:$0xf]
    %v239 = vld [vmem:[#allocation4 + $0x174] sm:$0xf]
    %v240 = vld [vmem:[#allocation4 + $0x178] sm:$0xf]
    %v241 = vld [vmem:[#allocation4 + $0x17c] sm:$0xf]
    %v242 = vld [vmem:[#allocation4 + $0x180] sm:$0xf]
    %v243 = vld [vmem:[#allocation4 + $0x184] sm:$0xf]
    %v244 = vld [vmem:[%s2] sm:$0x1]
    %v246 = vlaneseq
    %v247 = vshrl.u32 %v246, 7
    %v248 = vsub.s32 0, %v247
    %v249 = vrot.slane %v244, %v248
    %v349 = vunpack.c.l.b16 %v146
    %v350 = vunpack.c.l.b16 %v147
    %v351 = vunpack.c.l.b16 %v148
    %v352 = vunpack.c.l.b16 %v149
    %v353 = vunpack.c.l.b16 %v150
    %v354 = vunpack.c.l.b16 %v151
    %v355 = vunpack.c.l.b16 %v152
    %v356 = vunpack.c.l.b16 %v153
    %v357 = vunpack.c.l.b16 %v154
    %v358 = vunpack.c.l.b16 %v155
    %v359 = vunpack.c.l.b16 %v156
    %v360 = vunpack.c.l.b16 %v157
    %v361 = vunpack.c.l.b16 %v158
    %v362 = vunpack.c.l.b16 %v159
    %v363 = vunpack.c.l.b16 %v160
    %v364 = vunpack.c.l.b16 %v161
    %v365 = vunpack.c.l.b16 %v162
    %v366 = vunpack.c.l.b16 %v163
    %v367 = vunpack.c.l.b16 %v164
    %v368 = vunpack.c.l.b16 %v165
    %v369 = vunpack.c.l.b16 %v166
    %v370 = vunpack.c.l.b16 %v167
    %v371 = vunpack.c.l.b16 %v168
    %v372 = vunpack.c.l.b16 %v169
    %v373 = vunpack.c.l.b16 %v170
    %v374 = vunpack.c.l.b16 %v171
    %v375 = vunpack.c.l.b16 %v172
    %v376 = vunpack.c.l.b16 %v173
    %v377 = vunpack.c.l.b16 %v174
    %v378 = vunpack.c.l.b16 %v175
    %v379 = vunpack.c.l.b16 %v176
    %v380 = vunpack.c.l.b16 %v177
    %v381 = vunpack.c.l.b16 %v178
    %v382 = vunpack.c.l.b16 %v179
    %v383 = vunpack.c.l.b16 %v180
    %v384 = vunpack.c.l.b16 %v181
    %v385 = vunpack.c.l.b16 %v182
    %v386 = vunpack.c.l.b16 %v183
    %v387 = vunpack.c.l.b16 %v184
    %v388 = vunpack.c.l.b16 %v185
    %v389 = vunpack.c.l.b16 %v186
    %v390 = vunpack.c.l.b16 %v187
    %v391 = vunpack.c.l.b16 %v188
    %v392 = vunpack.c.l.b16 %v189
    %v393 = vunpack.c.l.b16 %v190
    %v394 = vunpack.c.l.b16 %v191
    %v395 = vunpack.c.l.b16 %v192
    %v396 = vunpack.c.l.b16 %v193
    %v397 = vunpack.c.l.b16 %v194
    %v398 = vunpack.c.l.b16 %v195
    %v399 = vunpack.c.l.b16 %v196
    %v400 = vunpack.c.l.b16 %v197
    %v401 = vunpack.c.l.b16 %v198
    %v402 = vunpack.c.l.b16 %v199
    %v403 = vunpack.c.l.b16 %v200
    %v404 = vunpack.c.l.b16 %v201
    %v405 = vunpack.c.l.b16 %v202
    %v406 = vunpack.c.l.b16 %v203
    %v407 = vunpack.c.l.b16 %v204
    %v408 = vunpack.c.l.b16 %v205
    %v409 = vunpack.c.l.b16 %v206
    %v410 = vunpack.c.l.b16 %v207
    %v411 = vunpack.c.l.b16 %v208
    %v412 = vunpack.c.l.b16 %v209
    %v413 = vunpack.c.l.b16 %v210
    %v414 = vunpack.c.l.b16 %v211
    %v415 = vunpack.c.l.b16 %v212
    %v416 = vunpack.c.l.b16 %v213
    %v417 = vunpack.c.l.b16 %v214
    %v418 = vunpack.c.l.b16 %v215
    %v419 = vunpack.c.l.b16 %v216
    %v420 = vunpack.c.l.b16 %v217
    %v421 = vunpack.c.l.b16 %v218
    %v422 = vunpack.c.l.b16 %v219
    %v423 = vunpack.c.l.b16 %v220
    %v424 = vunpack.c.l.b16 %v221
    %v425 = vunpack.c.l.b16 %v222
    %v426 = vunpack.c.l.b16 %v223
    %v427 = vunpack.c.l.b16 %v224
    %v428 = vunpack.c.l.b16 %v225
    %v429 = vunpack.c.l.b16 %v226
    %v430 = vunpack.c.l.b16 %v227
    %v431 = vunpack.c.l.b16 %v228
    %v432 = vunpack.c.l.b16 %v229
    %v433 = vunpack.c.l.b16 %v230
    %v434 = vunpack.c.l.b16 %v231
    %v435 = vunpack.c.l.b16 %v232
    %v436 = vunpack.c.l.b16 %v233
    %v437 = vunpack.c.l.b16 %v234
    %v438 = vunpack.c.l.b16 %v235
    %v439 = vunpack.c.l.b16 %v236
    %v440 = vunpack.c.l.b16 %v237
    %v441 = vunpack.c.l.b16 %v238
    %v442 = vunpack.c.l.b16 %v239
    %v443 = vunpack.c.l.b16 %v240
    %v444 = vunpack.c.l.b16 %v241
    %v445 = vunpack.c.l.b16 %v242
    %v446 = vunpack.c.l.b16 %v243
    %v447 = vpack.c.b16 %v350, %v349
    %v448 = vpack.c.b16 %v352, %v351
    %v449 = vpack.c.b16 %v354, %v353
    %v450 = vpack.c.b16 %v356, %v355
    %v451 = vpack.c.b16 %v358, %v357
    %v452 = vpack.c.b16 %v360, %v359
    %v453 = vpack.c.b16 %v362, %v361
    %v454 = vpack.c.b16 %v364, %v363
    %v455 = vpack.c.b16 %v366, %v365
    %v456 = vpack.c.b16 %v368, %v367
    %v457 = vpack.c.b16 %v370, %v369
    %v458 = vpack.c.b16 %v372, %v371
    %v459 = vpack.c.b16 %v374, %v373
    %v460 = vpack.c.b16 %v376, %v375
    %v461 = vpack.c.b16 %v378, %v377
    %v462 = vpack.c.b16 %v380, %v379
    %v463 = vpack.c.b16 %v382, %v381
    %v464 = vpack.c.b16 %v384, %v383
    %v465 = vpack.c.b16 %v386, %v385
    %v466 = vpack.c.b16 %v388, %v387
    %v467 = vpack.c.b16 %v390, %v389
    %v468 = vpack.c.b16 %v392, %v391
    %v469 = vpack.c.b16 %v394, %v393
    %v470 = vpack.c.b16 %v396, %v395
    %v471 = vpack.c.b16 %v398, %v397
    %v472 = vpack.c.b16 %v400, %v399
    %v473 = vpack.c.b16 %v402, %v401
    %v474 = vpack.c.b16 %v404, %v403
    %v475 = vpack.c.b16 %v406, %v405
    %v476 = vpack.c.b16 %v408, %v407
    %v477 = vpack.c.b16 %v410, %v409
    %v478 = vpack.c.b16 %v412, %v411
    %v479 = vpack.c.b16 %v414, %v413
    %v480 = vpack.c.b16 %v416, %v415
    %v481 = vpack.c.b16 %v418, %v417
    %v482 = vpack.c.b16 %v420, %v419
    %v483 = vpack.c.b16 %v422, %v421
    %v484 = vpack.c.b16 %v424, %v423
    %v485 = vpack.c.b16 %v426, %v425
    %v486 = vpack.c.b16 %v428, %v427
    %v487 = vpack.c.b16 %v430, %v429
    %v488 = vpack.c.b16 %v432, %v431
    %v489 = vpack.c.b16 %v434, %v433
    %v490 = vpack.c.b16 %v436, %v435
    %v491 = vpack.c.b16 %v438, %v437
    %v492 = vpack.c.b16 %v440, %v439
    %v493 = vpack.c.b16 %v442, %v441
    %v494 = vpack.c.b16 %v444, %v443
    %v495 = vpack.c.b16 %v446, %v445
    %vm545 = vcmask 130048
    %v547 = vsel %vm545, %v124, 0
    %v550 = vsel %vm545, %v131, 0
    %v553 = vsel %vm545, %v138, 0
    %v556 = vsel %vm545, %v145, 0
    %558 = vmatprep.subr.bf16.mxu0 0
    %559 = vmatpush1.bf16.msra.mxu0 %v454
    %560 = vmatprep.subr.bf16.mxu0 0
    %561 = vmatpush1.bf16.msra.mxu0 %v453
    %562 = vmatprep.subr.bf16.mxu0 0
    %563 = vmatpush1.bf16.msra.mxu0 %v452
    %564 = vmatprep.subr.bf16.mxu0 0
    %565 = vmatpush1.bf16.msra.mxu0 %v451
    %566 = vmatprep.subr.bf16.mxu0 0
    %567 = vmatpush1.bf16.msra.mxu0 %v450
    %568 = vmatprep.subr.bf16.mxu0 0
    %569 = vmatpush1.bf16.msra.mxu0 %v449
    %570 = vmatprep.subr.bf16.mxu0 0
    %571 = vmatpush1.bf16.msra.mxu0 %v448
    %572 = vmatprep.subr.bf16.mxu0 0
    %573 = vmatpush1.bf16.msra.mxu0 %v447
    %574 = vmatprep.subr.bf16.mxu0 0
    %575 = vmatpush2.bf16.msra.mxu0 %v462
    %576 = vmatprep.subr.bf16.mxu0 0
    %577 = vmatpush2.bf16.msra.mxu0 %v461
    %578 = vmatprep.subr.bf16.mxu0 0
    %579 = vmatpush2.bf16.msra.mxu0 %v460
    %580 = vmatprep.subr.bf16.mxu0 0
    %581 = vmatpush2.bf16.msra.mxu0 %v459
    %582 = vmatprep.subr.bf16.mxu0 0
    %583 = vmatpush2.bf16.msra.mxu0 %v458
    %584 = vmatprep.subr.bf16.mxu0 0
    %585 = vmatpush2.bf16.msra.mxu0 %v457
    %586 = vmatprep.subr.bf16.mxu0 0
    %587 = vmatpush2.bf16.msra.mxu0 %v456
    %588 = vmatprep.subr.bf16.mxu0 0
    %589 = vmatpush2.bf16.msra.mxu0 %v455
    %590 = vmatprep.mubr.bf16.mxu0 %v119
    %591 = vmatmul.mubr.bf16.gmra.mxu0 %v118
    %v592 = vpop.f32.mrf.mxu0
    %v593 = vadd.f32 %v249, %v592
    %v594 = vpop.f32.mrf.mxu0
    %v595 = vpop.f32.mrf.mxu0
    %v596 = vadd.f32 %v249, %v595
    %v597 = vpop.f32.mrf.mxu0
    %598 = vmatprep.mubr.bf16.mxu0 %v126
    %599 = vmatmul.mubr.bf16.gmra.mxu0 %v125
    %v600 = vpop.f32.mrf.mxu0
    %v601 = vadd.f32 %v249, %v600
    %v602 = vpop.f32.mrf.mxu0
    %v603 = vpop.f32.mrf.mxu0
    %v604 = vadd.f32 %v249, %v603
    %v605 = vpop.f32.mrf.mxu0
    %606 = vmatprep.mubr.bf16.mxu0 %v133
    %607 = vmatmul.mubr.bf16.gmra.mxu0 %v132
    %v608 = vpop.f32.mrf.mxu0
    %v609 = vadd.f32 %v249, %v608
    %v610 = vpop.f32.mrf.mxu0
    %v611 = vpop.f32.mrf.mxu0
    %v612 = vadd.f32 %v249, %v611
    %v613 = vpop.f32.mrf.mxu0
    %614 = vmatprep.mubr.bf16.mxu0 %v140
    %615 = vmatmul.mubr.bf16.gmra.mxu0 %v139
    %v616 = vpop.f32.mrf.mxu0
    %v617 = vadd.f32 %v249, %v616
    %v618 = vpop.f32.mrf.mxu0
    %v619 = vpop.f32.mrf.mxu0
    %v620 = vadd.f32 %v249, %v619
    %v621 = vpop.f32.mrf.mxu0
    %622 = vdwg.mxu0
    %623 = vmatprep.subr.bf16.mxu0 0
    %624 = vmatpush1.bf16.msra.mxu0 %v470
    %625 = vmatprep.subr.bf16.mxu0 0
    %626 = vmatpush1.bf16.msra.mxu0 %v469
    %627 = vmatprep.subr.bf16.mxu0 0
    %628 = vmatpush1.bf16.msra.mxu0 %v468
    %629 = vmatprep.subr.bf16.mxu0 0
    %630 = vmatpush1.bf16.msra.mxu0 %v467
    %631 = vmatprep.subr.bf16.mxu0 0
    %632 = vmatpush1.bf16.msra.mxu0 %v466
    %633 = vmatprep.subr.bf16.mxu0 0
    %634 = vmatpush1.bf16.msra.mxu0 %v465
    %635 = vmatprep.subr.bf16.mxu0 0
    %636 = vmatpush1.bf16.msra.mxu0 %v464
    %637 = vmatprep.subr.bf16.mxu0 0
    %638 = vmatpush1.bf16.msra.mxu0 %v463
    %639 = vmatprep.subr.bf16.mxu0 0
    %640 = vmatpush2.bf16.msra.mxu0 %v478
    %641 = vmatprep.subr.bf16.mxu0 0
    %642 = vmatpush2.bf16.msra.mxu0 %v477
    %643 = vmatprep.subr.bf16.mxu0 0
    %644 = vmatpush2.bf16.msra.mxu0 %v476
    %645 = vmatprep.subr.bf16.mxu0 0
    %646 = vmatpush2.bf16.msra.mxu0 %v475
    %647 = vmatprep.subr.bf16.mxu0 0
    %648 = vmatpush2.bf16.msra.mxu0 %v474
    %649 = vmatprep.subr.bf16.mxu0 0
    %650 = vmatpush2.bf16.msra.mxu0 %v473
    %651 = vmatprep.subr.bf16.mxu0 0
    %652 = vmatpush2.bf16.msra.mxu0 %v472
    %653 = vmatprep.subr.bf16.mxu0 0
    %654 = vmatpush2.bf16.msra.mxu0 %v471
    %655 = vmatprep.mubr.bf16.mxu0 %v121
    %656 = vmatmul.mubr.bf16.gmra.mxu0 %v120
    %v657 = vpop.f32.mrf.mxu0
    %v658 = vadd.f32 %v593, %v657
    %v659 = vpop.f32.mrf.mxu0
    %v660 = vpop.f32.mrf.mxu0
    %v661 = vadd.f32 %v596, %v660
    %v662 = vpop.f32.mrf.mxu0
    %663 = vmatprep.mubr.bf16.mxu0 %v128
    %664 = vmatmul.mubr.bf16.gmra.mxu0 %v127
    %v665 = vpop.f32.mrf.mxu0
    %v666 = vadd.f32 %v601, %v665
    %v667 = vpop.f32.mrf.mxu0
    %v668 = vpop.f32.mrf.mxu0
    %v669 = vadd.f32 %v604, %v668
    %v670 = vpop.f32.mrf.mxu0
    %671 = vmatprep.mubr.bf16.mxu0 %v135
    %672 = vmatmul.mubr.bf16.gmra.mxu0 %v134
    %v673 = vpop.f32.mrf.mxu0
    %v674 = vadd.f32 %v609, %v673
    %v675 = vpop.f32.mrf.mxu0
    %v676 = vpop.f32.mrf.mxu0
    %v677 = vadd.f32 %v612, %v676
    %v678 = vpop.f32.mrf.mxu0
    %679 = vmatprep.mubr.bf16.mxu0 %v142
    %680 = vmatmul.mubr.bf16.gmra.mxu0 %v141
    %v681 = vpop.f32.mrf.mxu0
    %v682 = vadd.f32 %v617, %v681
    %v683 = vpop.f32.mrf.mxu0
    %v684 = vpop.f32.mrf.mxu0
    %v685 = vadd.f32 %v620, %v684
    %v686 = vpop.f32.mrf.mxu0
    %687 = vdwg.mxu0
    %688 = vmatprep.subr.bf16.mxu0 0
    %689 = vmatpush1.bf16.msra.mxu0 %v486
    %690 = vmatprep.subr.bf16.mxu0 0
    %691 = vmatpush1.bf16.msra.mxu0 %v485
    %692 = vmatprep.subr.bf16.mxu0 0
    %693 = vmatpush1.bf16.msra.mxu0 %v484
    %694 = vmatprep.subr.bf16.mxu0 0
    %695 = vmatpush1.bf16.msra.mxu0 %v483
    %696 = vmatprep.subr.bf16.mxu0 0
    %697 = vmatpush1.bf16.msra.mxu0 %v482
    %698 = vmatprep.subr.bf16.mxu0 0
    %699 = vmatpush1.bf16.msra.mxu0 %v481
    %700 = vmatprep.subr.bf16.mxu0 0
    %701 = vmatpush1.bf16.msra.mxu0 %v480
    %702 = vmatprep.subr.bf16.mxu0 0
    %703 = vmatpush1.bf16.msra.mxu0 %v479
    %704 = vmatprep.subr.bf16.mxu0 0
    %705 = vmatpush2.bf16.msra.mxu0 %v494
    %706 = vmatprep.subr.bf16.mxu0 0
    %707 = vmatpush2.bf16.msra.mxu0 %v493
    %708 = vmatprep.subr.bf16.mxu0 0
    %709 = vmatpush2.bf16.msra.mxu0 %v492
    %710 = vmatprep.subr.bf16.mxu0 0
    %711 = vmatpush2.bf16.msra.mxu0 %v491
    %712 = vmatprep.subr.bf16.mxu0 0
    %713 = vmatpush2.bf16.msra.mxu0 %v490
    %714 = vmatprep.subr.bf16.mxu0 0
    %715 = vmatpush2.bf16.msra.mxu0 %v489
    %716 = vmatprep.subr.bf16.mxu0 0
    %717 = vmatpush2.bf16.msra.mxu0 %v488
    %718 = vmatprep.subr.bf16.mxu0 0
    %719 = vmatpush2.bf16.msra.mxu0 %v487
    %720 = vmatprep.mubr.bf16.mxu0 %v123
    %721 = vmatmul.mubr.bf16.gmra.mxu0 %v122
    %v722 = vpop.f32.mrf.mxu0
    %v723 = vadd.f32 %v658, %v722
    %v724 = vpop.f32.mrf.mxu0
    %v725 = vpop.f32.mrf.mxu0
    %v726 = vadd.f32 %v661, %v725
    %v727 = vpop.f32.mrf.mxu0
    %728 = vmatprep.mubr.bf16.mxu0 %v130
    %729 = vmatmul.mubr.bf16.gmra.mxu0 %v129
    %v730 = vpop.f32.mrf.mxu0
    %v731 = vadd.f32 %v666, %v730
    %v732 = vpop.f32.mrf.mxu0
    %v733 = vpop.f32.mrf.mxu0
    %v734 = vadd.f32 %v669, %v733
    %v735 = vpop.f32.mrf.mxu0
    %736 = vmatprep.mubr.bf16.mxu0 %v137
    %737 = vmatmul.mubr.bf16.gmra.mxu0 %v136
    %v738 = vpop.f32.mrf.mxu0
    %v739 = vadd.f32 %v674, %v738
    %v740 = vpop.f32.mrf.mxu0
    %v741 = vpop.f32.mrf.mxu0
    %v742 = vadd.f32 %v677, %v741
    %v743 = vpop.f32.mrf.mxu0
    %744 = vmatprep.mubr.bf16.mxu0 %v144
    %745 = vmatmul.mubr.bf16.gmra.mxu0 %v143
    %v746 = vpop.f32.mrf.mxu0
    %v747 = vadd.f32 %v682, %v746
    %v748 = vpop.f32.mrf.mxu0
    %v749 = vpop.f32.mrf.mxu0
    %v750 = vadd.f32 %v685, %v749
    %v751 = vpop.f32.mrf.mxu0
    %752 = vdwg.mxu0
    %753 = vmatprep.subr.bf16.mxu0 0
    %754 = vmatpush1.bf16.msra.mxu0 0
    %755 = vmatprep.subr.bf16.mxu0 0
    %756 = vmatpush1.bf16.msra.mxu0 0
    %757 = vmatprep.subr.bf16.mxu0 0
    %758 = vmatpush1.bf16.msra.mxu0 0
    %759 = vmatprep.subr.bf16.mxu0 0
    %760 = vmatpush1.bf16.msra.mxu0 0
    %761 = vmatprep.subr.bf16.mxu0 0
    %762 = vmatpush1.bf16.msra.mxu0 0
    %763 = vmatprep.subr.bf16.mxu0 0
    %764 = vmatpush1.bf16.msra.mxu0 0
    %765 = vmatprep.subr.bf16.mxu0 0
    %766 = vmatpush1.bf16.msra.mxu0 0
    %767 = vmatprep.subr.bf16.mxu0 0
    %768 = vmatpush1.bf16.msra.mxu0 %v495
    %769 = vmatprep.subr.bf16.mxu0 0
    %770 = vmatpush2.bf16.msra.mxu0 0
    %771 = vmatprep.subr.bf16.mxu0 0
    %772 = vmatpush2.bf16.msra.mxu0 0
    %773 = vmatprep.subr.bf16.mxu0 0
    %774 = vmatpush2.bf16.msra.mxu0 0
    %775 = vmatprep.subr.bf16.mxu0 0
    %776 = vmatpush2.bf16.msra.mxu0 0
    %777 = vmatprep.subr.bf16.mxu0 0
    %778 = vmatpush2.bf16.msra.mxu0 0
    %779 = vmatprep.subr.bf16.mxu0 0
    %780 = vmatpush2.bf16.msra.mxu0 0
    %781 = vmatprep.subr.bf16.mxu0 0
    %782 = vmatpush2.bf16.msra.mxu0 0
    %783 = vmatprep.subr.bf16.mxu0 0
    %784 = vmatpush2.bf16.msra.mxu0 0
    %785 = vmatprep.mubr.bf16.mxu0 0
    %786 = vmatmul.mubr.bf16.gmra.mxu0 %v547
    %v787 = vpop.f32.mrf.mxu0
    %v788 = vadd.f32 %v723, %v787
    %v789 = vpop.f32.mrf.mxu0
    %v790 = vpop.f32.mrf.mxu0
    %v791 = vadd.f32 %v726, %v790
    %v792 = vpop.f32.mrf.mxu0
    %793 = vmatprep.mubr.bf16.mxu0 0
    %794 = vmatmul.mubr.bf16.gmra.mxu0 %v550
    %v795 = vpop.f32.mrf.mxu0
    %v796 = vadd.f32 %v731, %v795
    %v797 = vpop.f32.mrf.mxu0
    %v798 = vpop.f32.mrf.mxu0
    %v799 = vadd.f32 %v734, %v798
    %v800 = vpop.f32.mrf.mxu0
    %801 = vmatprep.mubr.bf16.mxu0 0
    %802 = vmatmul.mubr.bf16.gmra.mxu0 %v553
    %v803 = vpop.f32.mrf.mxu0
    %v804 = vadd.f32 %v739, %v803
    %v805 = vpop.f32.mrf.mxu0
    %v806 = vpop.f32.mrf.mxu0
    %v807 = vadd.f32 %v742, %v806
    %v808 = vpop.f32.mrf.mxu0
    %809 = vmatprep.mubr.bf16.mxu0 0
    %810 = vmatmul.mubr.bf16.gmra.mxu0 %v556
    %v811 = vpop.f32.mrf.mxu0
    %v812 = vadd.f32 %v747, %v811
    %v813 = vpop.f32.mrf.mxu0
    %v814 = vpop.f32.mrf.mxu0
    %v815 = vadd.f32 %v750, %v814
    %v816 = vpop.f32.mrf.mxu0
    %817 = vdwg.mxu0
    %v818 = vmax.f32 %v788, 0.0
    %v819 = vmax.f32 %v791, 0.0
    %v820 = vmax.f32 %v796, 0.0
    %v821 = vmax.f32 %v799, 0.0
    %v822 = vmax.f32 %v804, 0.0
    %v823 = vmax.f32 %v807, 0.0
    %v824 = vmax.f32 %v812, 0.0
    %v825 = vmax.f32 %v815, 0.0
    %v826 = vpack.c.bf16 %v819, %v818
    %v827 = vpack.c.bf16 %v821, %v820
    %v828 = vpack.c.bf16 %v823, %v822
    %v829 = vpack.c.bf16 %v825, %v824
    %v830 = vld [vmem:[#allocation6] sm:$0xf]
    %v831 = vld [vmem:[#allocation6 + $0x4] sm:$0xf]
    %v832 = vld [vmem:[#allocation6 + $0x8] sm:$0xf]
    %v833 = vld [vmem:[#allocation6 + $0xc] sm:$0xf]
    %v834 = vld [vmem:[#allocation6 + $0x10] sm:$0xf]
    %v835 = vld [vmem:[#allocation6 + $0x14] sm:$0xf]
    %v836 = vld [vmem:[#allocation6 + $0x18] sm:$0xf]
    %v837 = vld [vmem:[#allocation6 + $0x1c] sm:$0xf]
    %v838 = vld [vmem:[#allocation6 + $0x20] sm:$0xf]
    %v839 = vld [vmem:[#allocation6 + $0x24] sm:$0xf]
    %v840 = vld [vmem:[#allocation6 + $0x28] sm:$0xf]
    %v841 = vld [vmem:[#allocation6 + $0x2c] sm:$0xf]
    %v842 = vld [vmem:[#allocation6 + $0x30] sm:$0xf]
    %v843 = vld [vmem:[#allocation6 + $0x34] sm:$0xf]
    %v844 = vld [vmem:[#allocation6 + $0x38] sm:$0xf]
    %v845 = vld [vmem:[#allocation6 + $0x3c] sm:$0xf]
    %v846 = vld [vmem:[%s4] sm:$0x1]
    %v848 = vlaneseq
    %v849 = vshrl.u32 %v848, 7
    %v850 = vsub.s32 0, %v849
    %v851 = vrot.slane %v846, %v850
    %v869 = vunpack.c.l.b16 %v830
    %v870 = vunpack.c.l.b16 %v831
    %v871 = vunpack.c.l.b16 %v832
    %v872 = vunpack.c.l.b16 %v833
    %v873 = vunpack.c.l.b16 %v834
    %v874 = vunpack.c.l.b16 %v835
    %v875 = vunpack.c.l.b16 %v836
    %v876 = vunpack.c.l.b16 %v837
    %v877 = vunpack.c.l.b16 %v838
    %v878 = vunpack.c.l.b16 %v839
    %v879 = vunpack.c.l.b16 %v840
    %v880 = vunpack.c.l.b16 %v841
    %v881 = vunpack.c.l.b16 %v842
    %v882 = vunpack.c.l.b16 %v843
    %v883 = vunpack.c.l.b16 %v844
    %v884 = vunpack.c.l.b16 %v845
    %v885 = vpack.c.b16 %v870, %v869
    %v886 = vpack.c.b16 %v872, %v871
    %v887 = vpack.c.b16 %v874, %v873
    %v888 = vpack.c.b16 %v876, %v875
    %v889 = vpack.c.b16 %v878, %v877
    %v890 = vpack.c.b16 %v880, %v879
    %v891 = vpack.c.b16 %v882, %v881
    %v892 = vpack.c.b16 %v884, %v883
    %901 = vmatprep.subr.bf16.mxu0 0
    %902 = vmatpush1.bf16.msra.mxu0 %v892
    %903 = vmatprep.subr.bf16.mxu0 0
    %904 = vmatpush1.bf16.msra.mxu0 %v891
    %905 = vmatprep.subr.bf16.mxu0 0
    %906 = vmatpush1.bf16.msra.mxu0 %v890
    %907 = vmatprep.subr.bf16.mxu0 0
    %908 = vmatpush1.bf16.msra.mxu0 %v889
    %909 = vmatprep.subr.bf16.mxu0 0
    %910 = vmatpush1.bf16.msra.mxu0 %v888
    %911 = vmatprep.subr.bf16.mxu0 0
    %912 = vmatpush1.bf16.msra.mxu0 %v887
    %913 = vmatprep.subr.bf16.mxu0 0
    %914 = vmatpush1.bf16.msra.mxu0 %v886
    %915 = vmatprep.subr.bf16.mxu0 0
    %916 = vmatpush1.bf16.msra.mxu0 %v885
    %917 = vmatprep.subr.bf16.mxu0 0
    %918 = vmatpush2.bf16.msra.mxu0 0
    %919 = vmatprep.subr.bf16.mxu0 0
    %920 = vmatpush2.bf16.msra.mxu0 0
    %921 = vmatprep.subr.bf16.mxu0 0
    %922 = vmatpush2.bf16.msra.mxu0 0
    %923 = vmatprep.subr.bf16.mxu0 0
    %924 = vmatpush2.bf16.msra.mxu0 0
    %925 = vmatprep.subr.bf16.mxu0 0
    %926 = vmatpush2.bf16.msra.mxu0 0
    %927 = vmatprep.subr.bf16.mxu0 0
    %928 = vmatpush2.bf16.msra.mxu0 0
    %929 = vmatprep.subr.bf16.mxu0 0
    %930 = vmatpush2.bf16.msra.mxu0 0
    %931 = vmatprep.subr.bf16.mxu0 0
    %932 = vmatpush2.bf16.msra.mxu0 0
    %933 = vmatprep.mubr.bf16.mxu0 0
    %934 = vmatmul.mubr.bf16.gmra.mxu0 %v826
    %v935 = vpop.f32.mrf.mxu0
    %v936 = vadd.f32 %v851, %v935
    %v937 = vpop.f32.mrf.mxu0
    %v938 = vpop.f32.mrf.mxu0
    %v939 = vadd.f32 %v851, %v938
    %v940 = vpop.f32.mrf.mxu0
    %941 = vmatprep.mubr.bf16.mxu0 0
    %942 = vmatmul.mubr.bf16.gmra.mxu0 %v827
    %v943 = vpop.f32.mrf.mxu0
    %v944 = vadd.f32 %v851, %v943
    %v945 = vpop.f32.mrf.mxu0
    %v946 = vpop.f32.mrf.mxu0
    %v947 = vadd.f32 %v851, %v946
    %v948 = vpop.f32.mrf.mxu0
    %949 = vmatprep.mubr.bf16.mxu0 0
    %950 = vmatmul.mubr.bf16.gmra.mxu0 %v828
    %v951 = vpop.f32.mrf.mxu0
    %v952 = vadd.f32 %v851, %v951
    %v953 = vpop.f32.mrf.mxu0
    %v954 = vpop.f32.mrf.mxu0
    %v955 = vadd.f32 %v851, %v954
    %v956 = vpop.f32.mrf.mxu0
    %957 = vmatprep.mubr.bf16.mxu0 0
    %958 = vmatmul.mubr.bf16.gmra.mxu0 %v829
    %v959 = vpop.f32.mrf.mxu0
    %v960 = vadd.f32 %v851, %v959
    %v961 = vpop.f32.mrf.mxu0
    %v962 = vpop.f32.mrf.mxu0
    %v963 = vadd.f32 %v851, %v962
    %v964 = vpop.f32.mrf.mxu0
    %965 = vdwg.mxu0
    %966 = vst [vmem:[%s5] sm:$0xff] %v936
    %967 = vst [vmem:[%s5 + $0x8] sm:$0xff] %v939
    %968 = vst [vmem:[%s5 + $0x10] sm:$0xff] %v944
    %969 = vst [vmem:[%s5 + $0x18] sm:$0xff] %v947
    %970 = vst [vmem:[%s5 + $0x20] sm:$0xff] %v952
    %971 = vst [vmem:[%s5 + $0x28] sm:$0xff] %v955
    %972 = vst [vmem:[%s5 + $0x30] sm:$0xff] %v960
    %973 = vst [vmem:[%s5 + $0x38] sm:$0xff] %v963
    // Predicated region
    $region34: #{nn_forward.1} parent=1 // pred_check
      _
    $region35: #{nn_forward.1} parent=1 // pred_check_branch
      %975 = sbr.rel (0) target = $region37
    $region36: #{nn_forward.1} parent=1 // pred_region
      _
    $region37: #{nn_forward.1} parent=1 // pred_fallthru
      _
    // Predicated region
    $region38: #{nn_forward.1} parent=1 // pred_check
      _
    $region39: #{nn_forward.1} parent=1 // pred_check_branch
      %977 = sbr.rel (0) target = $region41
    $region40: #{nn_forward.1} parent=1 // pred_region
      _
    $region41: #{nn_forward.1} parent=1 // pred_fallthru
      _
    %978 = vsyncpa [#allocation3], 1
    %979 = vsyncpa [#allocation5], 1

</llo_original>
